<compile_context>
chip_gen: v7x
topology: tpu7x:2x2x1
jax: 0.10.0
libtpu: 0.0.40
codegen_flags: <defaults>
</compile_context>

<pallas_src>
import functools
import math

import numpy as np
import jax
import jax.numpy as jnp
from jax import lax
from jax.experimental import pallas as pl
from jax.experimental.pallas import tpu as pltpu


# ----------------------------- Pallas kernel ------------------------------ #

def _fused_mlp_kernel(n_layers, x_ref, *refs):
    """Fused (Linear -> ReLU)*(L-1) -> Linear.

    x_ref : (tile_m, in_dim)  f32    row-major block straight from the input
    refs  : (Wt0, b0, Wt1, b1, ..., out_ref)
            Wt_l : (c_out_l, c_in_l) bf16   (transposed dense weight)
            b_l  : (c_out_l, 1)      f32
    out_ref: (out_dim_p, tile_m)     x.dtype (feature-major, rows lane-dense)
    """
    o_ref = refs[-1]
    wb = refs[:-1]

    xb = x_ref[...].astype(jnp.bfloat16)               # (tile_m, c_in) bf16
    # Layer 0: contract the trailing axis of BOTH operands -> (c_out, tile_m);
    # keeps the row dimension on the lane axis without an explicit transpose.
    h = lax.dot_general(
        wb[0][...], xb,
        dimension_numbers=(((1,), (1,)), ((), ())),
        preferred_element_type=jnp.float32,
    ) + wb[1][...]                                     # (c_out0, tile_m) f32

    for li in range(1, n_layers):
        h = jnp.maximum(h, 0.0).astype(jnp.bfloat16)   # ReLU + MXU operand cast
        h = jnp.dot(wb[2 * li][...], h,
                    preferred_element_type=jnp.float32) + wb[2 * li + 1][...]

    o_ref[...] = h.astype(o_ref.dtype)


def _round_up(a, m):
    return (a + m - 1) // m * m


def e_mlp_forward(x, params, tile_m=4096):
    """params: list of (W_full, b_full) expanded dense layer parameters.

    Runs the fused equivariant MLP over all rows of x (channels-last).
    """
    lead_shape = x.shape[:-1]
    in_dim = x.shape[-1]
    out_dim = int(np.asarray(params[-1][0]).shape[1])
    out_dim_p = _round_up(out_dim, 8)          # full 8-sublane output tile
    n_layers = len(params)

    xf = x.reshape(-1, in_dim)
    n_rows = xf.shape[0]

    # --- row tiling: lane-aligned tiles, >= 4 grid steps when rows allow ----
    n128 = _round_up(n_rows, 128)
    if n128 >= 4 * 128:
        min_steps = 4                          # >= 2 pipelined steps per TC on v7x
    elif n128 >= 2 * 128:
        min_steps = 2
    else:
        min_steps = 1
    tile = min(max(128, tile_m), n128 // min_steps)
    tile = max(128, tile // 128 * 128)
    n_pad = _round_up(n_rows, tile)
    grid = (n_pad // tile,)

    # Only the ragged row tail is padded (no transpose / cast pre-pass on x).
    if n_pad != n_rows:
        xf = jnp.pad(xf, ((0, n_pad - n_rows), (0, 0)))

    in_specs = [pl.BlockSpec((tile, in_dim), lambda i: (i, 0))]
    args = [xf]
    max_c = in_dim
    for li, (W, b) in enumerate(params):
        W = np.asarray(W, np.float32)
        b = np.asarray(b, np.float32)
        if li == n_layers - 1 and W.shape[1] < out_dim_p:
            # zero-padded output features -> unmasked 8-sublane stores
            W = np.pad(W, ((0, 0), (0, out_dim_p - W.shape[1])))
            b = np.pad(b, (0, out_dim_p - b.shape[0]))
        max_c = max(max_c, W.shape[1])
        Wt = jnp.asarray(W.T, jnp.bfloat16)              # (c_out, c_in)
        bc = jnp.asarray(b, jnp.float32).reshape(-1, 1)  # (c_out, 1)
        # Constant index_map -> weights/biases stay resident in VMEM.
        in_specs.append(pl.BlockSpec(Wt.shape, lambda i: (0, 0)))
        in_specs.append(pl.BlockSpec(bc.shape, lambda i: (0, 0)))
        args += [Wt, bc]

    # VMEM budget: double-buffered x block (lane-padded to 128), double-buffered
    # output block, f32 intermediates headroom, resident weights.
    out_itemsize = jnp.dtype(x.dtype).itemsize
    vmem_est = (2 * tile * 128 * 4
                + 2 * out_dim_p * tile * out_itemsize
                + 6 * max_c * tile * 4
                + (2 << 20))
    vmem_limit = int(min(max(vmem_est, 32 * 1024 * 1024), 64 * 1024 * 1024))

    kernel = functools.partial(_fused_mlp_kernel, n_layers)
    out_t = pl.pallas_call(
        kernel,
        out_shape=jax.ShapeDtypeStruct((out_dim_p, n_pad), x.dtype),
        grid=grid,
        in_specs=in_specs,
        out_specs=pl.BlockSpec((out_dim_p, tile), lambda i: (0, i)),
        compiler_params=pltpu.CompilerParams(
            dimension_semantics=("parallel",),
            vmem_limit_bytes=vmem_limit),
    )(*args)

    out = out_t[:out_dim, :n_rows].T                    # (n_rows, out_dim)
    return out.reshape(*lead_shape, out_dim)


# -------------------- parameter construction (plain JAX glue) -------------- #

def _rot_mat(theta):
    c, s = math.cos(theta), math.sin(theta)
    return np.array([[c, -s], [s, c]], dtype=np.float32)


def build_params(key, in_dim, out_dim, hidden_list, tranNum, corrd_scale=0.1):
    """Deterministically init EQ_linear_{input,inter,output} and expand each
    into a dense (W_full, b_full) pair whose columns encode the C_tranNum
    equivariant weight sharing."""
    c_in = (in_dim - 2) // tranNum
    params = []

    def normal(k, shape):
        return np.asarray(jax.random.normal(k, shape, dtype=jnp.float32)) * 0.1

    keys = jax.random.split(key, 3 * (len(hidden_list) + 1))
    ki = 0

    # ---- EQ_linear_input: (c_in -> hidden_list[0]//tranNum) + 2 coords ----
    c_out = hidden_list[0] // tranNum
    W_feat = normal(keys[ki], (tranNum, c_in, c_out)); ki += 1
    W_coord = normal(keys[ki], (2, c_out)); ki += 1
    bias = normal(keys[ki], (c_out,)); ki += 1
    W_full = np.zeros((tranNum * c_in + 2, tranNum * c_out), dtype=np.float32)
    for t in range(tranNum):
        Rt = _rot_mat(2.0 * math.pi * t / tranNum)
        for g in range(tranNum):
            W_full[g * c_in:(g + 1) * c_in, t * c_out:(t + 1) * c_out] = \
                W_feat[(g - t) % tranNum]
        # rotated + scaled coordinate weights for rotation slot t
        W_full[tranNum * c_in:, t * c_out:(t + 1) * c_out] = \
            corrd_scale * (Rt.T @ W_coord)
    params.append((W_full, np.tile(bias, tranNum)))
    c_prev = c_out

    # ---- EQ_linear_inter layers (block-circulant weight sharing) ----
    for hidden in hidden_list[1:]:
        c_out = hidden // tranNum
        W_feat = normal(keys[ki], (tranNum, c_prev, c_out)); ki += 1
        bias = normal(keys[ki], (c_out,)); ki += 1
        W_full = np.zeros((tranNum * c_prev, tranNum * c_out), dtype=np.float32)
        for t in range(tranNum):
            for g in range(tranNum):
                W_full[g * c_prev:(g + 1) * c_prev, t * c_out:(t + 1) * c_out] = \
                    W_feat[(g - t) % tranNum]
        params.append((W_full, np.tile(bias, tranNum)))
        c_prev = c_out

    # ---- EQ_linear_output: rotation-invariant head (mean-pool over group) --
    W_out = normal(keys[ki], (c_prev, out_dim)); ki += 1
    bias = normal(keys[ki], (out_dim,)); ki += 1
    W_full = np.tile(W_out / float(tranNum), (tranNum, 1))
    params.append((W_full, bias))

    return params


# ---------------------------------- main ----------------------------------- #

if __name__ == "__main__":
    tranNum = 4
    c_in = 4
    in_dim = tranNum * c_in + 2      # 18 : (in_dim - 2) // tranNum == 4
    out_dim = 3
    hidden_list = [32, 32]           # hidden // tranNum == 8

    key = jax.random.PRNGKey(0)
    kx, kp = jax.random.split(key)
    # small LIIF-style query grid: [batch=2, H=16, W=16, in_dim]
    x = jax.random.normal(kx, (2, 16, 16, in_dim), dtype=jnp.float32)

    params = build_params(kp, in_dim, out_dim, hidden_list, tranNum,
                          corrd_scale=0.1)

    y = e_mlp_forward(x, params)
    y = jax.block_until_ready(y)

    # pure-JAX reference of the same fused MLP in the same mixed precision
    # (bf16 MXU operands, f32 accumulation) -- sanity check.
    h = x.reshape(-1, in_dim).astype(jnp.bfloat16)
    for i, (W, b) in enumerate(params):
        h = jnp.dot(h, jnp.asarray(W, jnp.bfloat16),
                    preferred_element_type=jnp.float32) \
            + jnp.asarray(b, jnp.float32)
        if i < len(params) - 1:
            h = jnp.maximum(h, 0.0).astype(jnp.bfloat16)
    ref = h.reshape(*x.shape[:-1], -1)

    assert y.shape == (2, 16, 16, out_dim), y.shape
    np.testing.assert_allclose(np.asarray(y), np.asarray(ref),
                               rtol=1e-3, atol=1e-3)
    print("KERNEL_OK")
</pallas_src>

<mosaic_0001>
module attributes {stable_mosaic.version = 11 : i64} {
  func.func @_fused_mlp_kernel(%arg0: i32, %arg1: memref<128x18xf32, #tpu.memory_space<vmem>>, %arg2: memref<32x18xbf16, #tpu.memory_space<vmem>>, %arg3: memref<32x1xf32, #tpu.memory_space<vmem>>, %arg4: memref<32x32xbf16, #tpu.memory_space<vmem>>, %arg5: memref<32x1xf32, #tpu.memory_space<vmem>>, %arg6: memref<8x32xbf16, #tpu.memory_space<vmem>>, %arg7: memref<8x1xf32, #tpu.memory_space<vmem>>, %arg8: memref<8x128xf32, #tpu.memory_space<vmem>>) attributes {dimension_semantics = [#tpu.dimension_semantics<parallel>], iteration_bounds = array<i64: 4>, scalar_prefetch = 0 : i64, scratch_operands = 0 : i64, tpu.core_type = #tpu.core_type<tc>, window_params = [{transform_indices = @transform_0, window_bounds = array<i64: 128, 18>}, {pipeline_mode = #tpu.pipeline_mode<synchronous>, transform_indices = @transform_1, window_bounds = array<i64: 32, 18>}, {pipeline_mode = #tpu.pipeline_mode<synchronous>, transform_indices = @transform_2, window_bounds = array<i64: 32, 1>}, {pipeline_mode = #tpu.pipeline_mode<synchronous>, transform_indices = @transform_3, window_bounds = array<i64: 32, 32>}, {pipeline_mode = #tpu.pipeline_mode<synchronous>, transform_indices = @transform_4, window_bounds = array<i64: 32, 1>}, {pipeline_mode = #tpu.pipeline_mode<synchronous>, transform_indices = @transform_5, window_bounds = array<i64: 8, 32>}, {pipeline_mode = #tpu.pipeline_mode<synchronous>, transform_indices = @transform_6, window_bounds = array<i64: 8, 1>}, {transform_indices = @transform_7, window_bounds = array<i64: 8, 128>}]} {
    %c0 = arith.constant 0 : index
    %c0_0 = arith.constant 0 : index
    %0 = vector.load %arg1[%c0, %c0_0] : memref<128x18xf32, #tpu.memory_space<vmem>>, vector<128x18xf32>
    %1 = arith.truncf %0 : vector<128x18xf32> to vector<128x18xbf16>
    %c0_1 = arith.constant 0 : index
    %c0_2 = arith.constant 0 : index
    %2 = vector.load %arg2[%c0_1, %c0_2] : memref<32x18xbf16, #tpu.memory_space<vmem>>, vector<32x18xbf16>
    %cst = arith.constant dense<0.000000e+00> : vector<32x128xf32>
    %3 = tpu.matmul %2, %1, %cst {dimension_numbers = #tpu.dot_dimension_numbers<[1], [1], [0], [0], [0, 0, 1, 0], [], []>} : vector<32x18xbf16>, vector<128x18xbf16>, vector<32x128xf32> -> vector<32x128xf32>
    %c0_3 = arith.constant 0 : index
    %c0_4 = arith.constant 0 : index
    %4 = vector.load %arg3[%c0_3, %c0_4] : memref<32x1xf32, #tpu.memory_space<vmem>>, vector<32x1xf32>
    %5 = vector.broadcast %4 : vector<32x1xf32> to vector<32x128xf32>
    %6 = arith.addf %3, %5 : vector<32x128xf32>
    %cst_5 = arith.constant 0.000000e+00 : f32
    %7 = vector.broadcast %cst_5 : f32 to vector<32x128xf32>
    %8 = arith.maximumf %6, %7 : vector<32x128xf32>
    %9 = arith.truncf %8 : vector<32x128xf32> to vector<32x128xbf16>
    %c0_6 = arith.constant 0 : index
    %c0_7 = arith.constant 0 : index
    %10 = vector.load %arg4[%c0_6, %c0_7] : memref<32x32xbf16, #tpu.memory_space<vmem>>, vector<32x32xbf16>
    %cst_8 = arith.constant dense<0.000000e+00> : vector<32x128xf32>
    %11 = tpu.matmul %10, %9, %cst_8 {dimension_numbers = #tpu.dot_dimension_numbers<[1], [0], [0], [1], [0, 0, 1, 1], [], []>} : vector<32x32xbf16>, vector<32x128xbf16>, vector<32x128xf32> -> vector<32x128xf32>
    %c0_9 = arith.constant 0 : index
    %c0_10 = arith.constant 0 : index
    %12 = vector.load %arg5[%c0_9, %c0_10] : memref<32x1xf32, #tpu.memory_space<vmem>>, vector<32x1xf32>
    %13 = vector.broadcast %12 : vector<32x1xf32> to vector<32x128xf32>
    %14 = arith.addf %11, %13 : vector<32x128xf32>
    %cst_11 = arith.constant 0.000000e+00 : f32
    %15 = vector.broadcast %cst_11 : f32 to vector<32x128xf32>
    %16 = arith.maximumf %14, %15 : vector<32x128xf32>
    %17 = arith.truncf %16 : vector<32x128xf32> to vector<32x128xbf16>
    %c0_12 = arith.constant 0 : index
    %c0_13 = arith.constant 0 : index
    %18 = vector.load %arg6[%c0_12, %c0_13] : memref<8x32xbf16, #tpu.memory_space<vmem>>, vector<8x32xbf16>
    %cst_14 = arith.constant dense<0.000000e+00> : vector<8x128xf32>
    %19 = tpu.matmul %18, %17, %cst_14 {dimension_numbers = #tpu.dot_dimension_numbers<[1], [0], [0], [1], [0, 0, 1, 1], [], []>} : vector<8x32xbf16>, vector<32x128xbf16>, vector<8x128xf32> -> vector<8x128xf32>
    %c0_15 = arith.constant 0 : index
    %c0_16 = arith.constant 0 : index
    %20 = vector.load %arg7[%c0_15, %c0_16] : memref<8x1xf32, #tpu.memory_space<vmem>>, vector<8x1xf32>
    %21 = vector.broadcast %20 : vector<8x1xf32> to vector<8x128xf32>
    %22 = arith.addf %19, %21 : vector<8x128xf32>
    %c0_17 = arith.constant 0 : index
    %c0_18 = arith.constant 0 : index
    %23 = vector.load %arg8[%c0_17, %c0_18] : memref<8x128xf32, #tpu.memory_space<vmem>>, vector<8x128xf32>
    tpu.vector_store %arg8[%c0_17, %c0_18], %22 {strides = array<i32>} : memref<8x128xf32, #tpu.memory_space<vmem>>, vector<8x128xf32>,
    return
  }
  func.func @transform_0(%arg0: i32) -> (i32, i32) {
    %c0_i32 = arith.constant 0 : i32
    %c0_i32_0 = arith.constant 0 : i32
    return %arg0, %c0_i32 : i32, i32
  }
  func.func @transform_1(%arg0: i32) -> (i32, i32) {
    %c0_i32 = arith.constant 0 : i32
    %c0_i32_0 = arith.constant 0 : i32
    %c0_i32_1 = arith.constant 0 : i32
    return %c0_i32, %c0_i32_0 : i32, i32
  }
  func.func @transform_2(%arg0: i32) -> (i32, i32) {
    %c0_i32 = arith.constant 0 : i32
    %c0_i32_0 = arith.constant 0 : i32
    %c0_i32_1 = arith.constant 0 : i32
    return %c0_i32, %c0_i32_0 : i32, i32
  }
  func.func @transform_3(%arg0: i32) -> (i32, i32) {
    %c0_i32 = arith.constant 0 : i32
    %c0_i32_0 = arith.constant 0 : i32
    %c0_i32_1 = arith.constant 0 : i32
    return %c0_i32, %c0_i32_0 : i32, i32
  }
  func.func @transform_4(%arg0: i32) -> (i32, i32) {
    %c0_i32 = arith.constant 0 : i32
    %c0_i32_0 = arith.constant 0 : i32
    %c0_i32_1 = arith.constant 0 : i32
    return %c0_i32, %c0_i32_0 : i32, i32
  }
  func.func @transform_5(%arg0: i32) -> (i32, i32) {
    %c0_i32 = arith.constant 0 : i32
    %c0_i32_0 = arith.constant 0 : i32
    %c0_i32_1 = arith.constant 0 : i32
    return %c0_i32, %c0_i32_0 : i32, i32
  }
  func.func @transform_6(%arg0: i32) -> (i32, i32) {
    %c0_i32 = arith.constant 0 : i32
    %c0_i32_0 = arith.constant 0 : i32
    %c0_i32_1 = arith.constant 0 : i32
    return %c0_i32, %c0_i32_0 : i32, i32
  }
  func.func @transform_7(%arg0: i32) -> (i32, i32) {
    %c0_i32 = arith.constant 0 : i32
    %c0_i32_0 = arith.constant 0 : i32
    return %c0_i32, %arg0 : i32, i32
  }
}

</mosaic_0001>

<llo_original>
// kernel: tpu_custom_call.1
$region0: #{tpu_custom_call.1}
  #allocation0 [shape = 'u32[]', space=smem, size = 0x4, offset = 0x4, fixed_abs, tag = 'smem constant byte address 0x4 - core index']
  #allocation1 [shape = 'u32[144,128]{1,0:T(1,128)}', space=vmem, size = 0x12000, scoped, tag = 'internal scratch']
  %s0 = inlined_call_operand.vmem [shape: f32[512,18], index: 0, kind: input, shape index: {}]
  %s1 = inlined_call_operand.vmem [shape: bf16[32,18], index: 1, kind: input, shape index: {}]
  %s2 = inlined_call_operand.vmem [shape: f32[32,1], index: 2, kind: input, shape index: {}]
  %s3 = inlined_call_operand.vmem [shape: bf16[32,32], index: 3, kind: input, shape index: {}]
  %s4 = inlined_call_operand.vmem [shape: f32[32,1], index: 4, kind: input, shape index: {}]
  %s5 = inlined_call_operand.vmem [shape: bf16[8,32], index: 5, kind: input, shape index: {}]
  %s6 = inlined_call_operand.vmem [shape: f32[8,1], index: 6, kind: input, shape index: {}]
  %s7 = inlined_call_operand.hbm [shape: f32[8,512], index: 7, kind: output, shape index: {}]
  %s8 = sld [smem:[#allocation0]]
  $region61: #{tpu_custom_call.1} parent=0
    _
  %s10 = ssub.s32 1, %s8
  %s11 = scalar_select 0, %s10, %s8
  $region1: #{tpu_custom_call.1} parent=0
    #allocation2 [shape = 'u8[8192]{0}', space=vmem, size = 0x2000, scoped, tag = 'output window, operand 0']
    #allocation3 [shape = 's32[2]{0}', space=sflag, size = 0x8, scoped, tag = 'scoped memory for tpu_custom_call.1']
    %12 = vsyncpa [#allocation3], 0
    %s13 = scalar_lea.sflag [#allocation3], 1
    %14 = vsyncpa %s13, 0
    loop: start=0, step=1, limit=6
    $region2: #{tpu_custom_call.1} parent=1 // loop_pre_header
      _
    $region3: #{tpu_custom_call.1} parent=1 // loop_header
      %s16 = sphi 0, %s20
      %p17 = scmp.ge.s32.totalorder %s16, 6
      %s26 = sphi 0, %s28
      %s29 = sphi 0, %s26
      %s30 = sphi 0, %s29
      %s46 = sphi 0, %s30
      %s50 = sphi 0, %s50
      %s52 = sphi 0, %s50
      %s53 = sphi 0, %s52
      %s67 = sphi 0, %s53
      %s71 = sphi 0, %s71
      %s73 = sphi 0, %s71
      %s74 = sphi 0, %s73
      %s88 = sphi 0, %s74
      %s92 = sphi 0, %s92
      %s94 = sphi 0, %s92
      %s95 = sphi 0, %s94
      %s109 = sphi 0, %s95
      %s113 = sphi 0, %s113
      %s115 = sphi 0, %s113
      %s116 = sphi 0, %s115
      %s130 = sphi 0, %s116
      %s134 = sphi 0, %s134
      %s136 = sphi 0, %s134
      %s137 = sphi 0, %s136
      %s151 = sphi 0, %s137
      %s155 = sphi 0, %s155
      %s157 = sphi 0, %s155
      %s158 = sphi 0, %s157
      %s172 = sphi 0, %s158
      %s178 = sphi 0, %s180
      %s181 = sphi 0, %s178
      %s182 = sphi 0, %s181
      %s198 = sphi 0, %s182
    $region4: #{tpu_custom_call.1} parent=1 // loop_header_branch
      %19 = sbr.rel (%p17) target = $region8
    $region5: #{tpu_custom_call.1} parent=1 // loop_body
      %s21 = ssub.s32 %s16, 1
      %s22 = ssub.s32 %s16, 2
      %s23 = sadd.s32 %s16, 1
      %s24 = ssub.s32 %s16, %s23
      %p25 = scmp.eq.s32.totalorder %s24, 0
      %s27 = sadd.s32 %s26, 1
      %s28 = scalar_select %p25, %s26, %s27
      %p31 = pneg %p25
      %p32 = scmp.eq.s32.totalorder %s16, 3
      %p33 = por %p31, %p32
      %p34 = scmp.ne.s32.totalorder %s26, %s29
      %p35 = scmp.eq.s32.totalorder %s16, 0
      %p36 = por %p34, %p35
      %p37 = scmp.ne.s32.totalorder %s26, %s29
      %p38 = scmp.eq.s32.totalorder %s21, 3
      %p39 = por %p37, %p38
      %p40 = scmp.ne.s32.totalorder %s29, %s30
      %p41 = scmp.eq.s32.totalorder %s21, 0
      %p42 = por %p40, %p41
      %p43 = scmp.ne.s32.totalorder %s29, %s30
      %p44 = scmp.eq.s32.totalorder %s22, 3
      %p45 = por %p43, %p44
      %p47 = scmp.ne.s32.totalorder %s30, %s46
      %p48 = scmp.eq.s32.totalorder %s22, 0
      %p49 = por %p47, %p48
      %s51 = sadd.s32 %s50, 1
      %p54 = scmp.eq.s32.totalorder %s16, 3
      %p55 = scmp.ne.s32.totalorder %s50, %s52
      %p56 = scmp.eq.s32.totalorder %s16, 0
      %p57 = por %p55, %p56
      %p58 = scmp.ne.s32.totalorder %s50, %s52
      %p59 = scmp.eq.s32.totalorder %s21, 3
      %p60 = por %p58, %p59
      %p61 = scmp.ne.s32.totalorder %s52, %s53
      %p62 = scmp.eq.s32.totalorder %s21, 0
      %p63 = por %p61, %p62
      %p64 = scmp.ne.s32.totalorder %s52, %s53
      %p65 = scmp.eq.s32.totalorder %s22, 3
      %p66 = por %p64, %p65
      %p68 = scmp.ne.s32.totalorder %s53, %s67
      %p69 = scmp.eq.s32.totalorder %s22, 0
      %p70 = por %p68, %p69
      %s72 = sadd.s32 %s71, 1
      %p75 = scmp.eq.s32.totalorder %s16, 3
      %p76 = scmp.ne.s32.totalorder %s71, %s73
      %p77 = scmp.eq.s32.totalorder %s16, 0
      %p78 = por %p76, %p77
      %p79 = scmp.ne.s32.totalorder %s71, %s73
      %p80 = scmp.eq.s32.totalorder %s21, 3
      %p81 = por %p79, %p80
      %p82 = scmp.ne.s32.totalorder %s73, %s74
      %p83 = scmp.eq.s32.totalorder %s21, 0
      %p84 = por %p82, %p83
      %p85 = scmp.ne.s32.totalorder %s73, %s74
      %p86 = scmp.eq.s32.totalorder %s22, 3
      %p87 = por %p85, %p86
      %p89 = scmp.ne.s32.totalorder %s74, %s88
      %p90 = scmp.eq.s32.totalorder %s22, 0
      %p91 = por %p89, %p90
      %s93 = sadd.s32 %s92, 1
      %p96 = scmp.eq.s32.totalorder %s16, 3
      %p97 = scmp.ne.s32.totalorder %s92, %s94
      %p98 = scmp.eq.s32.totalorder %s16, 0
      %p99 = por %p97, %p98
      %p100 = scmp.ne.s32.totalorder %s92, %s94
      %p101 = scmp.eq.s32.totalorder %s21, 3
      %p102 = por %p100, %p101
      %p103 = scmp.ne.s32.totalorder %s94, %s95
      %p104 = scmp.eq.s32.totalorder %s21, 0
      %p105 = por %p103, %p104
      %p106 = scmp.ne.s32.totalorder %s94, %s95
      %p107 = scmp.eq.s32.totalorder %s22, 3
      %p108 = por %p106, %p107
      %p110 = scmp.ne.s32.totalorder %s95, %s109
      %p111 = scmp.eq.s32.totalorder %s22, 0
      %p112 = por %p110, %p111
      %s114 = sadd.s32 %s113, 1
      %p117 = scmp.eq.s32.totalorder %s16, 3
      %p118 = scmp.ne.s32.totalorder %s113, %s115
      %p119 = scmp.eq.s32.totalorder %s16, 0
      %p120 = por %p118, %p119
      %p121 = scmp.ne.s32.totalorder %s113, %s115
      %p122 = scmp.eq.s32.totalorder %s21, 3
      %p123 = por %p121, %p122
      %p124 = scmp.ne.s32.totalorder %s115, %s116
      %p125 = scmp.eq.s32.totalorder %s21, 0
      %p126 = por %p124, %p125
      %p127 = scmp.ne.s32.totalorder %s115, %s116
      %p128 = scmp.eq.s32.totalorder %s22, 3
      %p129 = por %p127, %p128
      %p131 = scmp.ne.s32.totalorder %s116, %s130
      %p132 = scmp.eq.s32.totalorder %s22, 0
      %p133 = por %p131, %p132
      %s135 = sadd.s32 %s134, 1
      %p138 = scmp.eq.s32.totalorder %s16, 3
      %p139 = scmp.ne.s32.totalorder %s134, %s136
      %p140 = scmp.eq.s32.totalorder %s16, 0
      %p141 = por %p139, %p140
      %p142 = scmp.ne.s32.totalorder %s134, %s136
      %p143 = scmp.eq.s32.totalorder %s21, 3
      %p144 = por %p142, %p143
      %p145 = scmp.ne.s32.totalorder %s136, %s137
      %p146 = scmp.eq.s32.totalorder %s21, 0
      %p147 = por %p145, %p146
      %p148 = scmp.ne.s32.totalorder %s136, %s137
      %p149 = scmp.eq.s32.totalorder %s22, 3
      %p150 = por %p148, %p149
      %p152 = scmp.ne.s32.totalorder %s137, %s151
      %p153 = scmp.eq.s32.totalorder %s22, 0
      %p154 = por %p152, %p153
      %s156 = sadd.s32 %s155, 1
      %p159 = scmp.eq.s32.totalorder %s16, 3
      %p160 = scmp.ne.s32.totalorder %s155, %s157
      %p161 = scmp.eq.s32.totalorder %s16, 0
      %p162 = por %p160, %p161
      %p163 = scmp.ne.s32.totalorder %s155, %s157
      %p164 = scmp.eq.s32.totalorder %s21, 3
      %p165 = por %p163, %p164
      %p166 = scmp.ne.s32.totalorder %s157, %s158
      %p167 = scmp.eq.s32.totalorder %s21, 0
      %p168 = por %p166, %p167
      %p169 = scmp.ne.s32.totalorder %s157, %s158
      %p170 = scmp.eq.s32.totalorder %s22, 3
      %p171 = por %p169, %p170
      %p173 = scmp.ne.s32.totalorder %s158, %s172
      %p174 = scmp.eq.s32.totalorder %s22, 0
      %p175 = por %p173, %p174
      %s176 = ssub.s32 %s16, %s23
      %p177 = scmp.eq.s32.totalorder %s176, 0
      %s179 = sadd.s32 %s178, 1
      %s180 = scalar_select %p177, %s178, %s179
      %p183 = pneg %p177
      %p184 = scmp.eq.s32.totalorder %s16, 3
      %p185 = por %p183, %p184
      %p186 = scmp.ne.s32.totalorder %s178, %s181
      %p187 = scmp.eq.s32.totalorder %s16, 0
      %p188 = por %p186, %p187
      %p189 = scmp.ne.s32.totalorder %s178, %s181
      %p190 = scmp.eq.s32.totalorder %s21, 3
      %p191 = por %p189, %p190
      %p192 = scmp.ne.s32.totalorder %s181, %s182
      %p193 = scmp.eq.s32.totalorder %s21, 0
      %p194 = por %p192, %p193
      %p195 = scmp.ne.s32.totalorder %s181, %s182
      %p196 = scmp.eq.s32.totalorder %s22, 3
      %p197 = por %p195, %p196
      %p199 = scmp.ne.s32.totalorder %s182, %s198
      %p200 = scmp.eq.s32.totalorder %s22, 0
      %p201 = por %p199, %p200
      %p202 = scmp.le.s32.totalorder 1, %s16
      %p203 = scmp.lt.s32.totalorder %s16, 5
      %p204 = pnand %p202, %p203
      %p205 = pneg %p204
      // Predicated region
      $region9: #{tpu_custom_call.1} parent=5 // pred_check
        _
      $region10: #{tpu_custom_call.1} parent=5 // pred_check_branch
        %207 = sbr.rel (%p204) target = $region12
      $region11: #{tpu_custom_call.1} parent=5 // pred_region
        %s208 = ssub.s32 %s16, 1
        // Predicated region
        $region13: #{tpu_custom_call.1} parent=11 // pred_check
          %p209 = pneg %p63
        $region14: #{tpu_custom_call.1} parent=11 // pred_check_branch
          %211 = sbr.rel (%p209) target = $region16
        $region15: #{tpu_custom_call.1} parent=11 // pred_region
          _
        $region16: #{tpu_custom_call.1} parent=11 // pred_fallthru
          _
        // Predicated region
        $region17: #{tpu_custom_call.1} parent=11 // pred_check
          %p212 = pneg %p84
        $region18: #{tpu_custom_call.1} parent=11 // pred_check_branch
          %214 = sbr.rel (%p212) target = $region20
        $region19: #{tpu_custom_call.1} parent=11 // pred_region
          _
        $region20: #{tpu_custom_call.1} parent=11 // pred_fallthru
          _
        // Predicated region
        $region21: #{tpu_custom_call.1} parent=11 // pred_check
          %p215 = pneg %p105
        $region22: #{tpu_custom_call.1} parent=11 // pred_check_branch
          %217 = sbr.rel (%p215) target = $region24
        $region23: #{tpu_custom_call.1} parent=11 // pred_region
          _
        $region24: #{tpu_custom_call.1} parent=11 // pred_fallthru
          _
        // Predicated region
        $region25: #{tpu_custom_call.1} parent=11 // pred_check
          %p218 = pneg %p126
        $region26: #{tpu_custom_call.1} parent=11 // pred_check_branch
          %220 = sbr.rel (%p218) target = $region28
        $region27: #{tpu_custom_call.1} parent=11 // pred_region
          _
        $region28: #{tpu_custom_call.1} parent=11 // pred_fallthru
          _
        // Predicated region
        $region29: #{tpu_custom_call.1} parent=11 // pred_check
          %p221 = pneg %p147
        $region30: #{tpu_custom_call.1} parent=11 // pred_check_branch
          %223 = sbr.rel (%p221) target = $region32
        $region31: #{tpu_custom_call.1} parent=11 // pred_region
          _
        $region32: #{tpu_custom_call.1} parent=11 // pred_fallthru
          _
        // Predicated region
        $region33: #{tpu_custom_call.1} parent=11 // pred_check
          %p224 = pneg %p168
        $region34: #{tpu_custom_call.1} parent=11 // pred_check_branch
          %226 = sbr.rel (%p224) target = $region36
        $region35: #{tpu_custom_call.1} parent=11 // pred_region
          _
        $region36: #{tpu_custom_call.1} parent=11 // pred_fallthru
          _
      $region12: #{tpu_custom_call.1} parent=5 // pred_fallthru
        _
      %p227 = scmp.lt.s32.totalorder %s16, 4
      // Predicated region
      $region37: #{tpu_custom_call.1} parent=5 // pred_check
        %p228 = pneg %p227
      $region38: #{tpu_custom_call.1} parent=5 // pred_check_branch
        %230 = sbr.rel (%p228) target = $region40
      $region39: #{tpu_custom_call.1} parent=5 // pred_region
        // Predicated region
        $region41: #{tpu_custom_call.1} parent=39 // pred_check
          %p231 = pneg %p36
        $region42: #{tpu_custom_call.1} parent=39 // pred_check_branch
          %233 = sbr.rel (%p231) target = $region44
        $region43: #{tpu_custom_call.1} parent=39 // pred_region
          %s234 = smul.u32 16, %s16
          %p235 = scmp.lt.s32.totalorder %s234, 63
          %s236 = scalar_select %p235, %s234, 63
          %s237 = smul.addr %s236, 8
          %s238 = scalar_lea.vmem %s0, %s237
          %s239 = smul.u32 16, %s16
        $region44: #{tpu_custom_call.1} parent=39 // pred_fallthru
          _
      $region40: #{tpu_custom_call.1} parent=5 // pred_fallthru
        _
      %p240 = scmp.le.s32.totalorder 1, %s16
      %p241 = scmp.lt.s32.totalorder %s16, 5
      %p242 = pnand %p240, %p241
      %p243 = pneg %p242
      // Predicated region
      $region45: #{tpu_custom_call.1} parent=5 // pred_check
        _
      $region46: #{tpu_custom_call.1} parent=5 // pred_check_branch
        %245 = sbr.rel (%p242) target = $region48
      $region47: #{tpu_custom_call.1} parent=5 // pred_region
        %s246 = ssub.s32 %s16, 1
        %s247 = smul.u32 16, %s21
        %p248 = scmp.lt.s32.totalorder %s247, 63
        %s249 = scalar_select %p248, %s247, 63
        %s250 = smul.addr %s249, 8
        %s251 = scalar_lea.vmem %s0, %s250
        %p252 = pneg %p42
        %p253 = pneg %p39
        %p254 = pneg %p63
        %p255 = pneg %p60
        %p256 = pneg %p84
        %p257 = pneg %p81
        %p258 = pneg %p105
        %p259 = pneg %p102
        %p260 = pneg %p126
        %p261 = pneg %p123
        %p262 = pneg %p147
        %p263 = pneg %p144
        %p264 = pneg %p168
        %p265 = pneg %p165
        %p266 = pneg %p194
        %p267 = pneg %p191
        %s268 = sand.u32 %s181, 1
        %s269 = scalar_lea.sflag [#allocation3], %s268
        %s270 = sand.u32 %s181, 1
        %s271 = smul.addr %s270, 8
        %s272 = scalar_lea.vmem [#allocation2], %s271
        %s273 = smul.u32 16, %s21
        %p274 = scmp.lt.s32.totalorder %s273, 63
        %s275 = scalar_select %p274, %s273, 63
        %s276 = smul.addr %s275, 8
        %s277 = scalar_lea.vmem %s0, %s276
        %s278 = smul.u32 16, %s21
        %v280 = vld [vmem:[%s277] sm:$0xff]
        %v281 = vld [vmem:[%s277 + $0x8] sm:$0xff]
        %v282 = vld [vmem:[%s277 + $0x10] sm:$0xff]
        %v283 = vld [vmem:[%s277 + $0x18] sm:$0xff]
        %v284 = vld [vmem:[%s277 + $0x20] sm:$0xff]
        %v285 = vld [vmem:[%s277 + $0x28] sm:$0xff]
        %v286 = vld [vmem:[%s277 + $0x30] sm:$0xff]
        %v287 = vld [vmem:[%s277 + $0x38] sm:$0xff]
        %v288 = vld [vmem:[%s277 + $0x40] sm:$0xff]
        %v289 = vld [vmem:[%s277 + $0x48] sm:$0xff]
        %v290 = vld [vmem:[%s277 + $0x50] sm:$0xff]
        %v291 = vld [vmem:[%s277 + $0x58] sm:$0xff]
        %v292 = vld [vmem:[%s277 + $0x60] sm:$0xff]
        %v293 = vld [vmem:[%s277 + $0x68] sm:$0xff]
        %v294 = vld [vmem:[%s277 + $0x70] sm:$0xff]
        %v295 = vld [vmem:[%s277 + $0x78] sm:$0xff]
        %v296 = vpack.c.bf16 %v281, %v280
        %v297 = vpack.c.bf16 %v283, %v282
        %v298 = vpack.c.bf16 %v285, %v284
        %v299 = vpack.c.bf16 %v287, %v286
        %v300 = vpack.c.bf16 %v289, %v288
        %v301 = vpack.c.bf16 %v291, %v290
        %v302 = vpack.c.bf16 %v293, %v292
        %v303 = vpack.c.bf16 %v295, %v294
        %v304 = vld [vmem:[%s1] sm:$0xf]
        %v305 = vld [vmem:[%s1 + $0x4] sm:$0xf]
        %v306 = vld [vmem:[%s1 + $0x8] sm:$0xf]
        %v307 = vld [vmem:[%s1 + $0xc] sm:$0xf]
        %v308 = vld [vmem:[%s2] sm:$0xff]
        %v309 = vld [vmem:[%s2 + $0x8] sm:$0xff]
        %v310 = vld [vmem:[%s2 + $0x10] sm:$0xff]
        %v311 = vld [vmem:[%s2 + $0x18] sm:$0xff]
        %313 = vset.pattern.permute.xlu0 0
        %314 = vperm.xlu0 %313, %v308
        %v315 = vpop.permute.xlu0 %314
        %318 = vset.pattern.permute.xlu0 0
        %319 = vperm.xlu0 %318, %v309
        %v320 = vpop.permute.xlu0 %319
        %323 = vset.pattern.permute.xlu0 0
        %324 = vperm.xlu0 %323, %v310
        %v325 = vpop.permute.xlu0 %324
        %328 = vset.pattern.permute.xlu0 0
        %329 = vperm.xlu0 %328, %v311
        %v330 = vpop.permute.xlu0 %329
        %v336 = vunpack.c.l.b16 %v304
        %v337 = vunpack.c.l.b16 %v305
        %v338 = vunpack.c.l.b16 %v306
        %v339 = vunpack.c.l.b16 %v307
        %v340 = vpack.c.b16 %v337, %v336
        %v341 = vpack.c.b16 %v339, %v338
        %vm342 = vcmask 146432
        %v344 = vsel %vm342, %v340, 0
        %v347 = vsel %vm342, %v341, 0
        %v350 = vsel %vm342, %v296, 0
        %v353 = vsel %vm342, %v297, 0
        %v356 = vsel %vm342, %v298, 0
        %v359 = vsel %vm342, %v299, 0
        %v362 = vsel %vm342, %v300, 0
        %v365 = vsel %vm342, %v301, 0
        %v368 = vsel %vm342, %v302, 0
        %v371 = vsel %vm342, %v303, 0
        %373 = vmatprep.subr.bf16.mxu0 0
        %374 = vmatpush1.bf16.xpose.msra.mxu0 %v350
        %375 = vmatprep.subr.bf16.mxu0 0
        %376 = vmatpush1.bf16.xpose.msra.mxu0 %v353
        %377 = vmatprep.subr.bf16.mxu0 0
        %378 = vmatpush1.bf16.xpose.msra.mxu0 %v356
        %379 = vmatprep.subr.bf16.mxu0 0
        %380 = vmatpush1.bf16.xpose.msra.mxu0 %v359
        %381 = vmatprep.subr.bf16.mxu0 0
        %382 = vmatpush1.bf16.xpose.msra.mxu0 %v362
        %383 = vmatprep.subr.bf16.mxu0 0
        %384 = vmatpush1.bf16.xpose.msra.mxu0 %v365
        %385 = vmatprep.subr.bf16.mxu0 0
        %386 = vmatpush1.bf16.xpose.msra.mxu0 %v368
        %387 = vmatprep.subr.bf16.mxu0 0
        %388 = vmatpush1.bf16.xpose.msra.mxu0 %v371
        %389 = vmatprep.subr.bf16.mxu0 0
        %390 = vmatpush1.bf16.xpose.msra.mxu0 0
        %391 = vmatprep.subr.bf16.mxu0 0
        %392 = vmatpush1.bf16.xpose.msra.mxu0 0
        %393 = vmatprep.subr.bf16.mxu0 0
        %394 = vmatpush1.bf16.xpose.msra.mxu0 0
        %395 = vmatprep.subr.bf16.mxu0 0
        %396 = vmatpush1.bf16.xpose.msra.mxu0 0
        %397 = vmatprep.subr.bf16.mxu0 0
        %398 = vmatpush1.bf16.xpose.msra.mxu0 0
        %399 = vmatprep.subr.bf16.mxu0 0
        %400 = vmatpush1.bf16.xpose.msra.mxu0 0
        %401 = vmatprep.subr.bf16.mxu0 0
        %402 = vmatpush1.bf16.xpose.msra.mxu0 0
        %403 = vmatprep.subr.bf16.mxu0 0
        %404 = vmatpush1.bf16.xpose.msra.mxu0 0
        %405 = vmatprep.mubr.bf16.mxu0 0
        %406 = vmatmul.mubr.bf16.gmra.mrb[0].mxu0 %v344
        %v407 = vpop.f32.mrb[0].mxu0
        %v408 = vadd.f32 %v315, %v407
        %v409 = vpop.f32.mrb[0].mxu0
        %v410 = vpop.f32.mrb[0].mxu0
        %v411 = vadd.f32 %v320, %v410
        %v412 = vpop.f32.mrb[0].mxu0
        %413 = vmatprep.mubr.bf16.mxu0 0
        %414 = vmatmul.mubr.bf16.gmra.mrb[0].mxu0 %v347
        %v415 = vpop.f32.mrb[0].mxu0
        %v416 = vadd.f32 %v325, %v415
        %v417 = vpop.f32.mrb[0].mxu0
        %v418 = vpop.f32.mrb[0].mxu0
        %v419 = vadd.f32 %v330, %v418
        %v420 = vpop.f32.mrb[0].mxu0
        %421 = vdwg.mxu0
        %v422 = vmax.f32 %v408, 0.0
        %v423 = vmax.f32 %v411, 0.0
        %v424 = vmax.f32 %v416, 0.0
        %v425 = vmax.f32 %v419, 0.0
        %v426 = vpack.c.bf16 %v423, %v422
        %v427 = vpack.c.bf16 %v425, %v424
        %v428 = vld [vmem:[%s3] sm:$0xf]
        %v429 = vld [vmem:[%s3 + $0x4] sm:$0xf]
        %v430 = vld [vmem:[%s3 + $0x8] sm:$0xf]
        %v431 = vld [vmem:[%s3 + $0xc] sm:$0xf]
        %v432 = vld [vmem:[%s4] sm:$0xff]
        %v433 = vld [vmem:[%s4 + $0x8] sm:$0xff]
        %v434 = vld [vmem:[%s4 + $0x10] sm:$0xff]
        %v435 = vld [vmem:[%s4 + $0x18] sm:$0xff]
        %437 = vset.pattern.permute.xlu0 0
        %438 = vperm.xlu0 %437, %v432
        %v439 = vpop.permute.xlu0 %438
        %442 = vset.pattern.permute.xlu0 0
        %443 = vperm.xlu0 %442, %v433
        %v444 = vpop.permute.xlu0 %443
        %447 = vset.pattern.permute.xlu0 0
        %448 = vperm.xlu0 %447, %v434
        %v449 = vpop.permute.xlu0 %448
        %452 = vset.pattern.permute.xlu0 0
        %453 = vperm.xlu0 %452, %v435
        %v454 = vpop.permute.xlu0 %453
        %v460 = vunpack.c.l.b16 %v428
        %v461 = vunpack.c.l.b16 %v429
        %v462 = vunpack.c.l.b16 %v430
        %v463 = vunpack.c.l.b16 %v431
        %v464 = vpack.c.b16 %v461, %v460
        %v465 = vpack.c.b16 %v463, %v462
        %vm466 = vcmask 261120
        %v468 = vsel %vm466, %v464, 0
        %v471 = vsel %vm466, %v465, 0
        %473 = vmatprep.subr.bf16.mxu0 0
        %474 = vmatpush1.bf16.msra.mxu0 %v426
        %475 = vmatprep.subr.bf16.mxu0 0
        %476 = vmatpush1.bf16.msra.mxu0 %v427
        %477 = vmatprep.subr.bf16.mxu0 0
        %478 = vmatpush1.bf16.msra.mxu0 0
        %479 = vmatprep.subr.bf16.mxu0 0
        %480 = vmatpush1.bf16.msra.mxu0 0
        %481 = vmatprep.subr.bf16.mxu0 0
        %482 = vmatpush1.bf16.msra.mxu0 0
        %483 = vmatprep.subr.bf16.mxu0 0
        %484 = vmatpush1.bf16.msra.mxu0 0
        %485 = vmatprep.subr.bf16.mxu0 0
        %486 = vmatpush1.bf16.msra.mxu0 0
        %487 = vmatprep.subr.bf16.mxu0 0
        %488 = vmatpush1.bf16.msra.mxu0 0
        %489 = vmatprep.subr.bf16.mxu0 0
        %490 = vmatpush1.bf16.msra.mxu0 0
        %491 = vmatprep.subr.bf16.mxu0 0
        %492 = vmatpush1.bf16.msra.mxu0 0
        %493 = vmatprep.subr.bf16.mxu0 0
        %494 = vmatpush1.bf16.msra.mxu0 0
        %495 = vmatprep.subr.bf16.mxu0 0
        %496 = vmatpush1.bf16.msra.mxu0 0
        %497 = vmatprep.subr.bf16.mxu0 0
        %498 = vmatpush1.bf16.msra.mxu0 0
        %499 = vmatprep.subr.bf16.mxu0 0
        %500 = vmatpush1.bf16.msra.mxu0 0
        %501 = vmatprep.subr.bf16.mxu0 0
        %502 = vmatpush1.bf16.msra.mxu0 0
        %503 = vmatprep.subr.bf16.mxu0 0
        %504 = vmatpush1.bf16.msra.mxu0 0
        %505 = vmatprep.mubr.bf16.mxu0 0
        %506 = vmatmul.mubr.bf16.gmra.mrb[0].mxu0 %v468
        %v507 = vpop.f32.mrb[0].mxu0
        %v508 = vadd.f32 %v439, %v507
        %v509 = vpop.f32.mrb[0].mxu0
        %v510 = vpop.f32.mrb[0].mxu0
        %v511 = vadd.f32 %v444, %v510
        %v512 = vpop.f32.mrb[0].mxu0
        %513 = vmatprep.mubr.bf16.mxu0 0
        %514 = vmatmul.mubr.bf16.gmra.mrb[0].mxu0 %v471
        %v515 = vpop.f32.mrb[0].mxu0
        %v516 = vadd.f32 %v449, %v515
        %v517 = vpop.f32.mrb[0].mxu0
        %v518 = vpop.f32.mrb[0].mxu0
        %v519 = vadd.f32 %v454, %v518
        %v520 = vpop.f32.mrb[0].mxu0
        %521 = vdwg.mxu0
        %v522 = vmax.f32 %v508, 0.0
        %v523 = vmax.f32 %v511, 0.0
        %v524 = vmax.f32 %v516, 0.0
        %v525 = vmax.f32 %v519, 0.0
        %v526 = vpack.c.bf16 %v523, %v522
        %v527 = vpack.c.bf16 %v525, %v524
        %v528 = vld [vmem:[%s5] sm:$0xf]
        %v529 = vld [vmem:[%s6] sm:$0xff]
        %531 = vset.pattern.permute.xlu0 0
        %532 = vperm.xlu0 %531, %v529
        %v533 = vpop.permute.xlu0 %532
        %v536 = vsel %vm466, %v528, 0
        %538 = vmatprep.subr.bf16.mxu0 0
        %539 = vmatpush1.bf16.msra.mxu0 %v526
        %540 = vmatprep.subr.bf16.mxu0 0
        %541 = vmatpush1.bf16.msra.mxu0 %v527
        %542 = vmatprep.subr.bf16.mxu0 0
        %543 = vmatpush1.bf16.msra.mxu0 0
        %544 = vmatprep.subr.bf16.mxu0 0
        %545 = vmatpush1.bf16.msra.mxu0 0
        %546 = vmatprep.subr.bf16.mxu0 0
        %547 = vmatpush1.bf16.msra.mxu0 0
        %548 = vmatprep.subr.bf16.mxu0 0
        %549 = vmatpush1.bf16.msra.mxu0 0
        %550 = vmatprep.subr.bf16.mxu0 0
        %551 = vmatpush1.bf16.msra.mxu0 0
        %552 = vmatprep.subr.bf16.mxu0 0
        %553 = vmatpush1.bf16.msra.mxu0 0
        %554 = vmatprep.subr.bf16.mxu0 0
        %555 = vmatpush1.bf16.msra.mxu0 0
        %556 = vmatprep.subr.bf16.mxu0 0
        %557 = vmatpush1.bf16.msra.mxu0 0
        %558 = vmatprep.subr.bf16.mxu0 0
        %559 = vmatpush1.bf16.msra.mxu0 0
        %560 = vmatprep.subr.bf16.mxu0 0
        %561 = vmatpush1.bf16.msra.mxu0 0
        %562 = vmatprep.subr.bf16.mxu0 0
        %563 = vmatpush1.bf16.msra.mxu0 0
        %564 = vmatprep.subr.bf16.mxu0 0
        %565 = vmatpush1.bf16.msra.mxu0 0
        %566 = vmatprep.subr.bf16.mxu0 0
        %567 = vmatpush1.bf16.msra.mxu0 0
        %568 = vmatprep.subr.bf16.mxu0 0
        %569 = vmatpush1.bf16.msra.mxu0 0
        %570 = vmatprep.mubr.bf16.mxu0 0
        %571 = vmatmul.mubr.bf16.gmra.mrb[0].mxu0 %v536
        %v572 = vpop.f32.mrb[0].mxu0
        %v573 = vadd.f32 %v533, %v572
        %v574 = vpop.f32.mrb[0].mxu0
        %v575 = vpop.f32.mrb[0].mxu0
        %v576 = vpop.f32.mrb[0].mxu0
        %577 = vdwg.mxu0
        %578 = vst [vmem:[%s272] sm:$0xff] %v573
        %s579 = sand.u32 %s181, 1
        %s580 = scalar_lea.sflag [#allocation3], %s579
        %s581 = sand.u32 %s181, 1
        %s582 = smul.addr %s581, 8
        %s583 = scalar_lea.vmem [#allocation2], %s582
        // Predicated region
        $region49: #{tpu_custom_call.1} parent=47 // pred_check
          %p584 = pneg %p191
        $region50: #{tpu_custom_call.1} parent=47 // pred_check_branch
          %586 = sbr.rel (%p584) target = $region52
        $region51: #{tpu_custom_call.1} parent=47 // pred_region
          %s588 = ssub.s32 128, 128
          %589 = vsyncadd %s580, %s588
          %s590 = smul.addr %s21, 128
          %s591 = scalar_lea.hbm %s7, %s590
          %s593 = sshll.u32 %s583, 4
          %s594 = int_to_ptr.vmem [resolvable:$true] %s593
          %596 = dma.vmem_to_hbm [thread:$0]  %s594, 128, %s591, %s580
        $region52: #{tpu_custom_call.1} parent=47 // pred_fallthru
          _
      $region48: #{tpu_custom_call.1} parent=5 // pred_fallthru
        _
      %p597 = scmp.le.s32.totalorder 2, %s16
      // Predicated region
      $region53: #{tpu_custom_call.1} parent=5 // pred_check
        %p598 = pneg %p597
      $region54: #{tpu_custom_call.1} parent=5 // pred_check_branch
        %600 = sbr.rel (%p598) target = $region56
      $region55: #{tpu_custom_call.1} parent=5 // pred_region
        %s601 = ssub.s32 %s16, 2
        // Predicated region
        $region57: #{tpu_custom_call.1} parent=55 // pred_check
          %p602 = pneg %p197
        $region58: #{tpu_custom_call.1} parent=55 // pred_check_branch
          %604 = sbr.rel (%p602) target = $region60
        $region59: #{tpu_custom_call.1} parent=55 // pred_region
          %s605 = sand.u32 %s182, 1
          %s606 = scalar_lea.sflag [#allocation3], %s605
          %s607 = sand.u32 %s182, 1
          %s608 = smul.addr %s607, 8
          %s609 = scalar_lea.vmem [#allocation2], %s608
          %610 = dma.done %s606, 128
        $region60: #{tpu_custom_call.1} parent=55 // pred_fallthru
          _
      $region56: #{tpu_custom_call.1} parent=5 // pred_fallthru
        _
    $region6: #{tpu_custom_call.1} parent=1 // loop_footer
      %s20 = sadd.s32 1, %s16
    $region7: #{tpu_custom_call.1} parent=1 // loop_footer_branch
      %15 = sbr.rel target = $region3
    $region8: #{tpu_custom_call.1} parent=1 // loop_exit
      _
    %611 = vsyncpa [#allocation3], 1
    %s612 = scalar_lea.sflag [#allocation3], 1
    %613 = vsyncpa %s612, 1

</llo_original>
